<compile_context>
chip_gen: v5e
topology: v5e:2x2
jax: 0.10.0
libtpu: 0.0.40
codegen_flags: <defaults>
</compile_context>

<pallas_src>
import jax
import jax.numpy as jnp
from jax.experimental import pallas as pl
from jax.experimental.pallas import tpu as pltpu


def _round_up(x, m):
    return ((x + m - 1) // m) * m


def attention_gru_kernel(x_ref, c_ref, g_ref, w_ref, b_ref, h_ref):
    """Fused AttentionGRUCell step.

    x_ref : (TB, K_pad)        packed [fact | C], zero-padded
    c_ref : (TB, H_pad)        C, zero-padded
    g_ref : (TB, 1)            per-row gate scalar
    w_ref : (K_pad, 3*H_pad)   packed [[Wr^T, W^T, 0], [Ur^T, 0, U^T]]
    b_ref : (1, 3*H_pad)       packed [br+bur | bw | bu]
    h_ref : (TB, H_pad)        output h
    """
    h_pad = h_ref.shape[-1]

    # One MXU dot + one packed bias add replaces 4 matmuls + 4 bias adds.
    z = jnp.dot(x_ref[...], w_ref[...],
                preferred_element_type=jnp.float32) + b_ref[...]

    # Lane-tile-aligned (128-wide) slices of the fused result.
    pre_r = z[:, 0 * h_pad:1 * h_pad]      # Wr(fact)+br + Ur(C)+bur
    wx    = z[:, 1 * h_pad:2 * h_pad]      # W(fact)+bw
    uc    = z[:, 2 * h_pad:3 * h_pad]      # U(C)+bu

    r = jax.nn.sigmoid(pre_r)
    h_tilda = jnp.tanh(wx + r * uc)

    c = c_ref[...]
    g = g_ref[...]                          # (TB, 1) broadcasts over lanes
    # h = g*h_tilda + (1-g)*C  ==  C + g*(h_tilda - C)
    h_ref[...] = c + g * (h_tilda - c)


def prepare_attention_gru_params(params, input_size, hidden_size):
    """One-time host-side packing: transpose, fuse, pre-sum biases, zero-pad."""
    I, H = input_size, hidden_size
    K = I + H
    H_pad = _round_up(H, 128)
    K_pad = _round_up(K, 128)

    w_packed = jnp.zeros((K_pad, 3 * H_pad), jnp.float32)
    # block 0: r pre-activation  = fact @ Wr^T + C @ Ur^T
    w_packed = w_packed.at[:I, 0 * H_pad:0 * H_pad + H].set(params["Wr_w"].T)
    w_packed = w_packed.at[I:K, 0 * H_pad:0 * H_pad + H].set(params["Ur_w"].T)
    # block 1: W(fact)
    w_packed = w_packed.at[:I, 1 * H_pad:1 * H_pad + H].set(params["W_w"].T)
    # block 2: U(C)
    w_packed = w_packed.at[I:K, 2 * H_pad:2 * H_pad + H].set(params["U_w"].T)

    b_packed = jnp.zeros((1, 3 * H_pad), jnp.float32)
    b_packed = b_packed.at[0, 0 * H_pad:0 * H_pad + H].set(
        params["Wr_b"] + params["Ur_b"])                 # folded bias
    b_packed = b_packed.at[0, 1 * H_pad:1 * H_pad + H].set(params["W_b"])
    b_packed = b_packed.at[0, 2 * H_pad:2 * H_pad + H].set(params["U_b"])

    return {
        "w_packed": w_packed,
        "b_packed": b_packed,
        "input_size": I,
        "hidden_size": H,
        "k_pad": K_pad,
        "h_pad": H_pad,
    }


def attention_gru_cell(fact, C, g, prepped):
    """fact: (B, I); C: (B, H); g: (B,). Returns h: (B, H)."""
    I = prepped["input_size"]
    H = prepped["hidden_size"]
    K_pad = prepped["k_pad"]
    H_pad = prepped["h_pad"]
    B = fact.shape[0]

    # Batch tile: at least one full f32 sublane tile (8); tile at 128 for big B.
    TB = 128 if B > 128 else _round_up(B, 8)
    B_pad = _round_up(B, TB)
    nb = B_pad // TB

    # Per-call activation prep (zero-pad to lane/sublane-dense tiles).
    x = jnp.zeros((B_pad, K_pad), jnp.float32)
    x = x.at[:B, :I].set(fact.astype(jnp.float32))
    x = x.at[:B, I:I + H].set(C.astype(jnp.float32))

    c_pad = jnp.zeros((B_pad, H_pad), jnp.float32).at[:B, :H].set(
        C.astype(jnp.float32))
    g_pad = jnp.zeros((B_pad, 1), jnp.float32).at[:B, 0].set(
        g.astype(jnp.float32))

    w_packed = prepped["w_packed"]
    b_packed = prepped["b_packed"]

    h_out = pl.pallas_call(
        attention_gru_kernel,
        out_shape=jax.ShapeDtypeStruct((B_pad, H_pad), jnp.float32),
        grid=(nb,),
        in_specs=[
            pl.BlockSpec((TB, K_pad), lambda i: (i, 0)),          # x
            pl.BlockSpec((TB, H_pad), lambda i: (i, 0)),          # C
            pl.BlockSpec((TB, 1), lambda i: (i, 0)),              # g
            pl.BlockSpec((K_pad, 3 * H_pad), lambda i: (0, 0)),   # packed W (resident)
            pl.BlockSpec((1, 3 * H_pad), lambda i: (0, 0)),       # packed bias
        ],
        out_specs=pl.BlockSpec((TB, H_pad), lambda i: (i, 0)),
        compiler_params=pltpu.CompilerParams(
            dimension_semantics=("parallel",)),                   # v7x: 2 TCs share batch
    )(x, c_pad, g_pad, w_packed, b_packed)

    return h_out[:B, :H]


def xavier_normal(key, out_features, in_features):
    # torch.nn.init.xavier_normal: std = sqrt(2 / (fan_in + fan_out))
    std = jnp.sqrt(2.0 / (in_features + out_features))
    return std * jax.random.normal(key, (out_features, in_features), dtype=jnp.float32)


if __name__ == "__main__":
    B, INPUT, HIDDEN = 4, 32, 32

    key = jax.random.PRNGKey(0)
    ks = jax.random.split(key, 12)

    # Deterministic parameter init (xavier_normal weights, nn.Linear-style biases).
    params = {
        "Wr_w": xavier_normal(ks[0], HIDDEN, INPUT),
        "Wr_b": jax.random.uniform(ks[1], (HIDDEN,), minval=-1.0, maxval=1.0) / jnp.sqrt(INPUT),
        "Ur_w": xavier_normal(ks[2], HIDDEN, HIDDEN),
        "Ur_b": jax.random.uniform(ks[3], (HIDDEN,), minval=-1.0, maxval=1.0) / jnp.sqrt(HIDDEN),
        "W_w": xavier_normal(ks[4], HIDDEN, INPUT),
        "W_b": jax.random.uniform(ks[5], (HIDDEN,), minval=-1.0, maxval=1.0) / jnp.sqrt(INPUT),
        "U_w": xavier_normal(ks[6], HIDDEN, HIDDEN),
        "U_b": jax.random.uniform(ks[7], (HIDDEN,), minval=-1.0, maxval=1.0) / jnp.sqrt(HIDDEN),
    }

    fact = jax.random.normal(ks[8], (B, INPUT), dtype=jnp.float32)
    C = jax.random.normal(ks[9], (B, HIDDEN), dtype=jnp.float32)
    g = jax.random.uniform(ks[10], (B,), dtype=jnp.float32)

    # One-time packing (hoisted out of the per-call path).
    prepped = prepare_attention_gru_params(params, INPUT, HIDDEN)

    h = attention_gru_cell(fact, C, g, prepped)
    h = jax.block_until_ready(h)

    # Pure-JAX reference for sanity.
    def ref(fact, C, g, p):
        r = jax.nn.sigmoid(fact @ p["Wr_w"].T + p["Wr_b"] + C @ p["Ur_w"].T + p["Ur_b"])
        h_tilda = jnp.tanh(fact @ p["W_w"].T + p["W_b"] + r * (C @ p["U_w"].T + p["U_b"]))
        gg = g[:, None]
        return gg * h_tilda + (1.0 - gg) * C

    expected = ref(fact, C, g, params)
    assert h.shape == (B, HIDDEN)
    assert jnp.allclose(h, expected, atol=1e-5, rtol=1e-5), "mismatch vs reference"

    print("KERNEL_OK")
</pallas_src>

<mosaic_0001>
module attributes {stable_mosaic.version = 11 : i64} {
  func.func @attention_gru_kernel(%arg0: i32, %arg1: memref<8x128xf32, #tpu.memory_space<vmem>>, %arg2: memref<8x128xf32, #tpu.memory_space<vmem>>, %arg3: memref<8x1xf32, #tpu.memory_space<vmem>>, %arg4: memref<128x384xf32, #tpu.memory_space<vmem>>, %arg5: memref<1x384xf32, #tpu.memory_space<vmem>>, %arg6: memref<8x128xf32, #tpu.memory_space<vmem>>) attributes {dimension_semantics = [#tpu.dimension_semantics<parallel>], iteration_bounds = array<i64: 1>, scalar_prefetch = 0 : i64, scratch_operands = 0 : i64, tpu.core_type = #tpu.core_type<tc>, window_params = [{transform_indices = @transform_0, window_bounds = array<i64: 8, 128>}, {transform_indices = @transform_1, window_bounds = array<i64: 8, 128>}, {transform_indices = @transform_2, window_bounds = array<i64: 8, 1>}, {pipeline_mode = #tpu.pipeline_mode<synchronous>, transform_indices = @transform_3, window_bounds = array<i64: 128, 384>}, {pipeline_mode = #tpu.pipeline_mode<synchronous>, transform_indices = @transform_4, window_bounds = array<i64: 1, 384>}, {transform_indices = @transform_5, window_bounds = array<i64: 8, 128>}]} {
    %c0 = arith.constant 0 : index
    %c0_0 = arith.constant 0 : index
    %0 = vector.load %arg1[%c0, %c0_0] : memref<8x128xf32, #tpu.memory_space<vmem>>, vector<8x128xf32>
    %c0_1 = arith.constant 0 : index
    %c0_2 = arith.constant 0 : index
    %1 = vector.load %arg4[%c0_1, %c0_2] : memref<128x384xf32, #tpu.memory_space<vmem>>, vector<128x384xf32>
    %cst = arith.constant dense<0.000000e+00> : vector<8x384xf32>
    %2 = tpu.matmul %0, %1, %cst {dimension_numbers = #tpu.dot_dimension_numbers<[1], [0], [0], [1], [0, 0, 1, 1], [], []>} : vector<8x128xf32>, vector<128x384xf32>, vector<8x384xf32> -> vector<8x384xf32>
    %c0_3 = arith.constant 0 : index
    %c0_4 = arith.constant 0 : index
    %3 = vector.load %arg5[%c0_3, %c0_4] : memref<1x384xf32, #tpu.memory_space<vmem>>, vector<1x384xf32>
    %4 = vector.broadcast %3 : vector<1x384xf32> to vector<8x384xf32>
    %5 = arith.addf %2, %4 : vector<8x384xf32>
    %6 = vector.extract_strided_slice %5 {offsets = [0, 0], sizes = [8, 128], strides = [1, 1]} : vector<8x384xf32> to vector<8x128xf32>
    %7 = vector.extract_strided_slice %5 {offsets = [0, 128], sizes = [8, 128], strides = [1, 1]} : vector<8x384xf32> to vector<8x128xf32>
    %8 = vector.extract_strided_slice %5 {offsets = [0, 256], sizes = [8, 128], strides = [1, 1]} : vector<8x384xf32> to vector<8x128xf32>
    %9 = arith.negf %6 : vector<8x128xf32>
    %10 = math.exp %9 : vector<8x128xf32>
    %cst_5 = arith.constant 1.000000e+00 : f32
    %11 = vector.broadcast %cst_5 : f32 to vector<8x128xf32>
    %12 = arith.addf %11, %10 : vector<8x128xf32>
    %13 = arith.divf %11, %12 : vector<8x128xf32>
    %14 = arith.mulf %13, %8 : vector<8x128xf32>
    %15 = arith.addf %7, %14 : vector<8x128xf32>
    %16 = math.tanh %15 : vector<8x128xf32>
    %c0_6 = arith.constant 0 : index
    %c0_7 = arith.constant 0 : index
    %17 = vector.load %arg2[%c0_6, %c0_7] : memref<8x128xf32, #tpu.memory_space<vmem>>, vector<8x128xf32>
    %c0_8 = arith.constant 0 : index
    %c0_9 = arith.constant 0 : index
    %18 = vector.load %arg3[%c0_8, %c0_9] : memref<8x1xf32, #tpu.memory_space<vmem>>, vector<8x1xf32>
    %19 = arith.subf %16, %17 : vector<8x128xf32>
    %20 = vector.broadcast %18 : vector<8x1xf32> to vector<8x128xf32>
    %21 = arith.mulf %20, %19 : vector<8x128xf32>
    %22 = arith.addf %17, %21 : vector<8x128xf32>
    %c0_10 = arith.constant 0 : index
    %c0_11 = arith.constant 0 : index
    %23 = vector.load %arg6[%c0_10, %c0_11] : memref<8x128xf32, #tpu.memory_space<vmem>>, vector<8x128xf32>
    tpu.vector_store %arg6[%c0_10, %c0_11], %22 {strides = array<i32>} : memref<8x128xf32, #tpu.memory_space<vmem>>, vector<8x128xf32>,
    return
  }
  func.func @transform_0(%arg0: i32) -> (i32, i32) {
    %c0_i32 = arith.constant 0 : i32
    %c0_i32_0 = arith.constant 0 : i32
    return %arg0, %c0_i32 : i32, i32
  }
  func.func @transform_1(%arg0: i32) -> (i32, i32) {
    %c0_i32 = arith.constant 0 : i32
    %c0_i32_0 = arith.constant 0 : i32
    return %arg0, %c0_i32 : i32, i32
  }
  func.func @transform_2(%arg0: i32) -> (i32, i32) {
    %c0_i32 = arith.constant 0 : i32
    %c0_i32_0 = arith.constant 0 : i32
    return %arg0, %c0_i32 : i32, i32
  }
  func.func @transform_3(%arg0: i32) -> (i32, i32) {
    %c0_i32 = arith.constant 0 : i32
    %c0_i32_0 = arith.constant 0 : i32
    %c0_i32_1 = arith.constant 0 : i32
    return %c0_i32, %c0_i32_0 : i32, i32
  }
  func.func @transform_4(%arg0: i32) -> (i32, i32) {
    %c0_i32 = arith.constant 0 : i32
    %c0_i32_0 = arith.constant 0 : i32
    %c0_i32_1 = arith.constant 0 : i32
    return %c0_i32, %c0_i32_0 : i32, i32
  }
  func.func @transform_5(%arg0: i32) -> (i32, i32) {
    %c0_i32 = arith.constant 0 : i32
    %c0_i32_0 = arith.constant 0 : i32
    return %arg0, %c0_i32 : i32, i32
  }
}

</mosaic_0001>

<llo_original>
// kernel: tpu_custom_call.1
$region0: #{tpu_custom_call.1}
  #allocation0 [shape = 'u32[]', space=smem, size = 0x4, offset = 0x4, fixed_abs, tag = 'smem constant byte address 0x4 - core index']
  #allocation1 [shape = 'u32[72,128]{1,0:T(1,128)}', space=vmem, size = 0x9000, scoped, tag = 'internal scratch']
  %s0 = inlined_call_operand.vmem [shape: f32[8,128], index: 0, kind: input, shape index: {}]
  %s1 = inlined_call_operand.hbm [shape: f32[8,128], index: 1, kind: input, shape index: {}]
  %s2 = inlined_call_operand.vmem [shape: f32[8,1], index: 2, kind: input, shape index: {}]
  %s3 = inlined_call_operand.hbm [shape: f32[128,384], index: 3, kind: input, shape index: {}]
  %s4 = inlined_call_operand.hbm [shape: f32[1,384], index: 4, kind: input, shape index: {}]
  %s5 = inlined_call_operand.hbm [shape: f32[8,128], index: 5, kind: output, shape index: {}]
  %s6 = sld [smem:[#allocation0]]
  $region42: #{tpu_custom_call.1} parent=0
    _
  %s8 = ssub.s32 1, %s6
  %s9 = scalar_select 0, %s8, %s6
  $region1: #{tpu_custom_call.1} parent=0
    #allocation2 [shape = 'u8[4096]{0}', space=vmem, size = 0x1000, scoped, tag = 'input window, operand 1, single buffered']
    #allocation3 [shape = 's32[1]{0}', space=sflag, size = 0x4, scoped, tag = 'scoped memory for tpu_custom_call.1']
    #allocation4 [shape = 's32[1]{0}', space=sflag, size = 0x4, scoped, tag = 'scoped memory for tpu_custom_call.1']
    #allocation5 [shape = 'u8[196608]{0}', space=vmem, size = 0x30000, scoped, tag = 'input window, operand 3, single buffered']
    #allocation6 [shape = 's32[1]{0}', space=sflag, size = 0x4, scoped, tag = 'scoped memory for tpu_custom_call.1']
    #allocation7 [shape = 'u8[1536]{0}', space=vmem, size = 0x800, scoped, tag = 'input window, operand 4, single buffered']
    #allocation8 [shape = 'u8[4096]{0}', space=vmem, size = 0x1000, scoped, tag = 'output window, operand 0, single buffered']
    %10 = vsyncpa [#allocation3], 0
    %11 = vsyncpa [#allocation6], 0
    %12 = vsyncpa [#allocation4], 0
    // Predicated region
    $region2: #{tpu_custom_call.1} parent=1 // pred_check
      _
    $region3: #{tpu_custom_call.1} parent=1 // pred_check_branch
      %14 = sbr.rel (0) target = $region5
    $region4: #{tpu_custom_call.1} parent=1 // pred_region
      _
    $region5: #{tpu_custom_call.1} parent=1 // pred_fallthru
      _
    // Predicated region
    $region6: #{tpu_custom_call.1} parent=1 // pred_check
      _
    $region7: #{tpu_custom_call.1} parent=1 // pred_check_branch
      %16 = sbr.rel (0) target = $region9
    $region8: #{tpu_custom_call.1} parent=1 // pred_region
      %18 = vsyncadd [#allocation3], 0
      %s20 = sshll.u32 %s1, 4
      %s21 = int_to_ptr.hbm [resolvable:$true] %s20
      %s22 = sshll.u32 [#allocation2], 4
      %s23 = int_to_ptr.vmem [resolvable:$true] %s22
      %25 = dma.hbm_to_vmem [thread:$0]  %s21, 128, %s23, [#allocation3]
    $region9: #{tpu_custom_call.1} parent=1 // pred_fallthru
      _
    // Predicated region
    $region10: #{tpu_custom_call.1} parent=1 // pred_check
      _
    $region11: #{tpu_custom_call.1} parent=1 // pred_check_branch
      %27 = sbr.rel (0) target = $region13
    $region12: #{tpu_custom_call.1} parent=1 // pred_region
      _
    $region13: #{tpu_custom_call.1} parent=1 // pred_fallthru
      _
    // Predicated region
    $region14: #{tpu_custom_call.1} parent=1 // pred_check
      _
    $region15: #{tpu_custom_call.1} parent=1 // pred_check_branch
      %29 = sbr.rel (0) target = $region17
    $region16: #{tpu_custom_call.1} parent=1 // pred_region
      %31 = vsyncadd [#allocation6], 0
      %s32 = sshll.u32 %s3, 4
      %s33 = int_to_ptr.hbm [resolvable:$true] %s32
      %s34 = sshll.u32 [#allocation5], 4
      %s35 = int_to_ptr.vmem [resolvable:$true] %s34
      %40 = dma.hbm_to_vmem [thread:$0]  %s33, 6144, %s35, [#allocation6], 384, 384, 24
    $region17: #{tpu_custom_call.1} parent=1 // pred_fallthru
      _
    // Predicated region
    $region18: #{tpu_custom_call.1} parent=1 // pred_check
      _
    $region19: #{tpu_custom_call.1} parent=1 // pred_check_branch
      %42 = sbr.rel (0) target = $region21
    $region20: #{tpu_custom_call.1} parent=1 // pred_region
      %44 = vsyncadd [#allocation6], 0
      %s46 = sshll.u32 %s4, 4
      %s47 = int_to_ptr.hbm [resolvable:$true] %s46
      %s48 = sshll.u32 [#allocation7], 4
      %s49 = int_to_ptr.vmem [resolvable:$true] %s48
      %51 = dma.hbm_to_vmem [thread:$0]  %s47, 48, %s49, [#allocation6]
    $region21: #{tpu_custom_call.1} parent=1 // pred_fallthru
      _
    // Predicated region
    $region22: #{tpu_custom_call.1} parent=1 // pred_check
      _
    $region23: #{tpu_custom_call.1} parent=1 // pred_check_branch
      %53 = sbr.rel (0) target = $region25
    $region24: #{tpu_custom_call.1} parent=1 // pred_region
      %55 = dma.done [#allocation3], 128
    $region25: #{tpu_custom_call.1} parent=1 // pred_fallthru
      _
    // Predicated region
    $region26: #{tpu_custom_call.1} parent=1 // pred_check
      _
    $region27: #{tpu_custom_call.1} parent=1 // pred_check_branch
      %57 = sbr.rel (0) target = $region29
    $region28: #{tpu_custom_call.1} parent=1 // pred_region
      %59 = dma.done [#allocation6], 6144
    $region29: #{tpu_custom_call.1} parent=1 // pred_fallthru
      _
    // Predicated region
    $region30: #{tpu_custom_call.1} parent=1 // pred_check
      _
    $region31: #{tpu_custom_call.1} parent=1 // pred_check_branch
      %61 = sbr.rel (0) target = $region33
    $region32: #{tpu_custom_call.1} parent=1 // pred_region
      %63 = dma.done [#allocation6], 48
    $region33: #{tpu_custom_call.1} parent=1 // pred_fallthru
      _
    %v64 = vld [vmem:[%s0] sm:$0xff]
    %v65 = vld [vmem:[#allocation5] sm:$0xff]
    %v66 = vld [vmem:[#allocation5 + $0x8] sm:$0xff]
    %v67 = vld [vmem:[#allocation5 + $0x10] sm:$0xff]
    %v68 = vld [vmem:[#allocation5 + $0x18] sm:$0xff]
    %v69 = vld [vmem:[#allocation5 + $0x20] sm:$0xff]
    %v70 = vld [vmem:[#allocation5 + $0x28] sm:$0xff]
    %v71 = vld [vmem:[#allocation5 + $0x30] sm:$0xff]
    %v72 = vld [vmem:[#allocation5 + $0x38] sm:$0xff]
    %v73 = vld [vmem:[#allocation5 + $0x40] sm:$0xff]
    %v74 = vld [vmem:[#allocation5 + $0x48] sm:$0xff]
    %v75 = vld [vmem:[#allocation5 + $0x50] sm:$0xff]
    %v76 = vld [vmem:[#allocation5 + $0x58] sm:$0xff]
    %v77 = vld [vmem:[#allocation5 + $0x60] sm:$0xff]
    %v78 = vld [vmem:[#allocation5 + $0x68] sm:$0xff]
    %v79 = vld [vmem:[#allocation5 + $0x70] sm:$0xff]
    %v80 = vld [vmem:[#allocation5 + $0x78] sm:$0xff]
    %v81 = vld [vmem:[#allocation5 + $0x80] sm:$0xff]
    %v82 = vld [vmem:[#allocation5 + $0x88] sm:$0xff]
    %v83 = vld [vmem:[#allocation5 + $0x90] sm:$0xff]
    %v84 = vld [vmem:[#allocation5 + $0x98] sm:$0xff]
    %v85 = vld [vmem:[#allocation5 + $0xa0] sm:$0xff]
    %v86 = vld [vmem:[#allocation5 + $0xa8] sm:$0xff]
    %v87 = vld [vmem:[#allocation5 + $0xb0] sm:$0xff]
    %v88 = vld [vmem:[#allocation5 + $0xb8] sm:$0xff]
    %v89 = vld [vmem:[#allocation5 + $0xc0] sm:$0xff]
    %v90 = vld [vmem:[#allocation5 + $0xc8] sm:$0xff]
    %v91 = vld [vmem:[#allocation5 + $0xd0] sm:$0xff]
    %v92 = vld [vmem:[#allocation5 + $0xd8] sm:$0xff]
    %v93 = vld [vmem:[#allocation5 + $0xe0] sm:$0xff]
    %v94 = vld [vmem:[#allocation5 + $0xe8] sm:$0xff]
    %v95 = vld [vmem:[#allocation5 + $0xf0] sm:$0xff]
    %v96 = vld [vmem:[#allocation5 + $0xf8] sm:$0xff]
    %v97 = vld [vmem:[#allocation5 + $0x100] sm:$0xff]
    %v98 = vld [vmem:[#allocation5 + $0x108] sm:$0xff]
    %v99 = vld [vmem:[#allocation5 + $0x110] sm:$0xff]
    %v100 = vld [vmem:[#allocation5 + $0x118] sm:$0xff]
    %v101 = vld [vmem:[#allocation5 + $0x120] sm:$0xff]
    %v102 = vld [vmem:[#allocation5 + $0x128] sm:$0xff]
    %v103 = vld [vmem:[#allocation5 + $0x130] sm:$0xff]
    %v104 = vld [vmem:[#allocation5 + $0x138] sm:$0xff]
    %v105 = vld [vmem:[#allocation5 + $0x140] sm:$0xff]
    %v106 = vld [vmem:[#allocation5 + $0x148] sm:$0xff]
    %v107 = vld [vmem:[#allocation5 + $0x150] sm:$0xff]
    %v108 = vld [vmem:[#allocation5 + $0x158] sm:$0xff]
    %v109 = vld [vmem:[#allocation5 + $0x160] sm:$0xff]
    %v110 = vld [vmem:[#allocation5 + $0x168] sm:$0xff]
    %v111 = vld [vmem:[#allocation5 + $0x170] sm:$0xff]
    %v112 = vld [vmem:[#allocation5 + $0x178] sm:$0xff]
    %v113 = vld [vmem:[#allocation7] sm:$0x7]
    %v115 = vperm.slane %v113, 0
    %v116 = vperm.slane %v113, 1
    %v117 = vperm.slane %v113, 2
    %121 = vmatpush.msra.mxu0 %v110
    %122 = vmatpush.msra.mxu0 %v107
    %123 = vmatpush.msra.mxu0 %v104
    %124 = vmatpush.msra.mxu0 %v101
    %125 = vmatpush.msra.mxu0 %v98
    %126 = vmatpush.msra.mxu0 %v95
    %127 = vmatpush.msra.mxu0 %v92
    %128 = vmatpush.msra.mxu0 %v89
    %129 = vmatpush.msra.mxu0 %v86
    %130 = vmatpush.msra.mxu0 %v83
    %131 = vmatpush.msra.mxu0 %v80
    %132 = vmatpush.msra.mxu0 %v77
    %133 = vmatpush.msra.mxu0 %v74
    %134 = vmatpush.msra.mxu0 %v71
    %135 = vmatpush.msra.mxu0 %v68
    %136 = vmatpush.msra.mxu0 %v65
    %137 = vmatmul.f32.gmra.mxu0 %v64
    %v138 = vpop.f32.mrf.mxu0
    %v139 = vadd.f32 %v115, %v138
    %140 = vdwg.mxu0
    %141 = vmatpush.msra.mxu0 %v111
    %142 = vmatpush.msra.mxu0 %v108
    %143 = vmatpush.msra.mxu0 %v105
    %144 = vmatpush.msra.mxu0 %v102
    %145 = vmatpush.msra.mxu0 %v99
    %146 = vmatpush.msra.mxu0 %v96
    %147 = vmatpush.msra.mxu0 %v93
    %148 = vmatpush.msra.mxu0 %v90
    %149 = vmatpush.msra.mxu0 %v87
    %150 = vmatpush.msra.mxu0 %v84
    %151 = vmatpush.msra.mxu0 %v81
    %152 = vmatpush.msra.mxu0 %v78
    %153 = vmatpush.msra.mxu0 %v75
    %154 = vmatpush.msra.mxu0 %v72
    %155 = vmatpush.msra.mxu0 %v69
    %156 = vmatpush.msra.mxu0 %v66
    %157 = vmatmul.f32.gmra.mxu0 %v64
    %v158 = vpop.f32.mrf.mxu0
    %v159 = vadd.f32 %v116, %v158
    %160 = vdwg.mxu0
    %161 = vmatpush.msra.mxu0 %v112
    %162 = vmatpush.msra.mxu0 %v109
    %163 = vmatpush.msra.mxu0 %v106
    %164 = vmatpush.msra.mxu0 %v103
    %165 = vmatpush.msra.mxu0 %v100
    %166 = vmatpush.msra.mxu0 %v97
    %167 = vmatpush.msra.mxu0 %v94
    %168 = vmatpush.msra.mxu0 %v91
    %169 = vmatpush.msra.mxu0 %v88
    %170 = vmatpush.msra.mxu0 %v85
    %171 = vmatpush.msra.mxu0 %v82
    %172 = vmatpush.msra.mxu0 %v79
    %173 = vmatpush.msra.mxu0 %v76
    %174 = vmatpush.msra.mxu0 %v73
    %175 = vmatpush.msra.mxu0 %v70
    %176 = vmatpush.msra.mxu0 %v67
    %177 = vmatmul.f32.gmra.mxu0 %v64
    %v178 = vpop.f32.mrf.mxu0
    %v179 = vadd.f32 %v117, %v178
    %180 = vdwg.mxu0
    %v181 = vxor.u32 %v139, 2147483648
    %v182 = vmul.f32 %v181, 1.442695
    %v183 = vpow.pop %v182
    %v184 = vadd.f32 %v183, 1.0
    %v185 = vrcp.pop %v184
    %v186 = vmul.f32 %v184, %v185
    %v187 = vsub.f32 1.0, %v186
    %v188 = vmul.f32 %v185, %v187
    %v189 = vadd.f32 %v185, %v188
    %vm190 = vweird.f32 %v184
    %vm191 = vweird.f32 %v185
    %vm192 = vmor %vm190, %vm191
    %v193 = vsel %vm192, %v185, %v189
    %v194 = vand.u32 2147483647, %v184
    %vm195 = vcmp.eq.f32.partialorder %v194, 8.507059e+37
    %v196 = vand.u32 %v184, 2147483648
    %v197 = vor.u32 1.1754944e-38, %v196
    %v198 = vsel %vm195, %v197, %v193
    %v199 = vmul.f32 1.0, %v198
    %v200 = vmul.f32 %v199, %v179
    %v201 = vadd.f32 %v159, %v200
    %v202 = vtanh.pop %v201
    %v203 = vld [vmem:[#allocation2] sm:$0xff]
    %v204 = vld [vmem:[%s2] sm:$0xff]
    %v205 = vsub.f32 %v202, %v203
    %207 = vset.pattern.permute.xlu0 0
    %208 = vperm.xlu0 %207, %v204
    %v209 = vpop.permute.xlu0 %208
    %v211 = vmul.f32 %v209, %v205
    %v212 = vadd.f32 %v203, %v211
    %213 = vst [vmem:[#allocation8] sm:$0xff] %v212
    // Predicated region
    $region34: #{tpu_custom_call.1} parent=1 // pred_check
      _
    $region35: #{tpu_custom_call.1} parent=1 // pred_check_branch
      %215 = sbr.rel (0) target = $region37
    $region36: #{tpu_custom_call.1} parent=1 // pred_region
      %217 = vsyncadd [#allocation4], 0
      %s219 = sshll.u32 [#allocation8], 4
      %s220 = int_to_ptr.vmem [resolvable:$true] %s219
      %s221 = sshll.u32 %s5, 4
      %s222 = int_to_ptr.hbm [resolvable:$true] %s221
      %224 = dma.vmem_to_hbm [thread:$0]  %s220, 128, %s222, [#allocation4]
    $region37: #{tpu_custom_call.1} parent=1 // pred_fallthru
      _
    // Predicated region
    $region38: #{tpu_custom_call.1} parent=1 // pred_check
      _
    $region39: #{tpu_custom_call.1} parent=1 // pred_check_branch
      %226 = sbr.rel (0) target = $region41
    $region40: #{tpu_custom_call.1} parent=1 // pred_region
      %228 = dma.done [#allocation4], 128
    $region41: #{tpu_custom_call.1} parent=1 // pred_fallthru
      _
    %229 = vsyncpa [#allocation3], 1
    %230 = vsyncpa [#allocation6], 1
    %231 = vsyncpa [#allocation4], 1

</llo_original>
